<compile_context>
chip_gen: v5e
topology: v5e:2x2
jax: 0.10.0
libtpu: 0.0.40
codegen_flags: <defaults>
</compile_context>

<pallas_src>
import math
from functools import partial

import jax
import jax.numpy as jnp
import numpy as np
from jax.experimental import pallas as pl
from jax.experimental.pallas import tpu as pltpu


def _attn_kernel(x_ref, wqkv_ref, bqkv_ref, wp_ref, bp_ref, o_ref, *acc_scratch,
                 block_h, approx_recip):
    # Grid: (batch_tiles [parallel], head_groups [arbitrary/reduction]).
    # NOTE: the accumulator init/finalize below requires the head-group axis to remain the
    # innermost (fastest-iterating) grid axis.
    g = pl.program_id(1)
    last_g = pl.num_programs(1) - 1

    bt, t, c = x_ref.shape
    gd = wp_ref.shape[0]              # block_h * head_dim
    dh = gd // block_h
    m = bt * t
    dtype = x_ref.dtype               # MXU operand dtype (bf16 by default)

    # f32 accumulator: the resident output block itself when o_ref is f32, else a VMEM scratch.
    acc_ref = acc_scratch[0] if acc_scratch else o_ref

    x2 = x_ref[...].reshape(m, c)     # (M, C); T % 8 enforced by the wrapper when bt > 1

    # q/k/v split on the leading axis of the fused weight -> no mid-vreg lane slicing for the
    # split.  1/sqrt(dh) and the query-bias scale were folded into wqkv/bqkv at fuse time.
    q2 = jnp.dot(x2, wqkv_ref[0], preferred_element_type=jnp.float32) + bqkv_ref[0]
    k2 = jnp.dot(x2, wqkv_ref[1], preferred_element_type=jnp.float32) + bqkv_ref[1]
    v2 = jnp.dot(x2, wqkv_ref[2], preferred_element_type=jnp.float32) + bqkv_ref[2]

    # Per-head attention inside the head group (unrolled at trace time).  No mask in this
    # module; attn_drop is identity in eval mode.  Softmax math stays in f32.
    # TODO(synk): for long sequences (T >~ 1-2K) tile the key axis with an online softmax
    # (flash-style) so the (T, T) scores never materialize, and interleave the exp() of score
    # block j with the QK^T matmul of block j+1 (EUP/MXU overlap) - matters on v6e/v7x.
    y_heads = []
    for j in range(block_h):
        cols = slice(j * dh, (j + 1) * dh)
        q = q2[:, cols].astype(dtype).reshape(bt, t, dh)
        k = k2[:, cols].astype(dtype).reshape(bt, t, dh)
        v = v2[:, cols].astype(dtype).reshape(bt, t, dh)
        att = jnp.einsum('btd,bsd->bts', q, k, preferred_element_type=jnp.float32)
        att = jnp.exp(att - jnp.max(att, axis=-1, keepdims=True))
        denom = jnp.sum(att, axis=-1, keepdims=True)
        if approx_recip:
            att = att * pl.reciprocal(denom, approx=True)   # EUP slot: effectively free
        else:
            att = att / denom                               # exact softmax for f32-strict callers
        y_heads.append(jnp.einsum('bts,bsd->btd', att.astype(dtype), v,
                                  preferred_element_type=jnp.float32))
    y = y_heads[0] if block_h == 1 else jnp.concatenate(y_heads, axis=-1)   # (bt, t, gd) f32

    # Output projection for this head group: K = gd (~128) contraction, summed over groups.
    contrib = jnp.dot(y.reshape(m, gd).astype(dtype), wp_ref[...],
                      preferred_element_type=jnp.float32).reshape(bt, t, c)

    @pl.when(g == 0)
    def _():
        acc_ref[...] = jnp.zeros_like(acc_ref)

    acc_ref[...] += contrib

    @pl.when(g == last_g)
    def _():
        # resid_drop is identity in eval mode.
        o_ref[...] = (acc_ref[...] + bp_ref[...]).astype(o_ref.dtype)


def fuse_self_attention_params(wq, bq, wk, bk, wv, bv, wp, bp, *, num_heads,
                               compute_dtype=jnp.bfloat16, block_h=None):
    """One-time weight fusion (hoisted out of the per-call path).

    Returns fused params: wqkv (G, 3, C, gd) with the 1/sqrt(Dh) scale and query bias folded
    into the q slice, bqkv (G, 3, 1, gd) f32, wp (G, gd, C), bp (1, C) f32, where
    gd = block_h * Dh and G = num_heads // block_h.
    """
    C = wq.shape[0]
    assert wq.shape == (C, C) and wk.shape == (C, C) and wv.shape == (C, C) and wp.shape == (C, C)
    assert C % num_heads == 0
    Dh = C // num_heads

    if block_h is None:
        # Target a ~128-deep contraction for the per-group output projection (exactly fills the
        # v5e MXU; acceptable half-depth on v6e/v7x - raise the target to 256 there if desired).
        block_h = max(1, min(num_heads, 128 // max(Dh, 1)))
    while num_heads % block_h:
        block_h -= 1
    G = num_heads // block_h
    gd = block_h * Dh

    scale = 1.0 / math.sqrt(Dh)
    wqkv = jnp.stack([wq * scale, wk, wv], axis=0).reshape(3, C, G, gd)
    wqkv = jnp.transpose(wqkv, (2, 0, 1, 3)).astype(compute_dtype)          # (G, 3, C, gd)
    bqkv = jnp.stack([bq * scale, bk, bv], axis=0).reshape(3, G, 1, gd)
    bqkv = jnp.transpose(bqkv, (1, 0, 2, 3)).astype(jnp.float32)            # (G, 3, 1, gd)
    wp_g = wp.reshape(G, gd, C).astype(compute_dtype)                       # per-group proj rows
    bp2 = bp.reshape(1, C).astype(jnp.float32)

    return dict(wqkv=wqkv, bqkv=bqkv, wp=wp_g, bp=bp2,
                num_heads=num_heads, head_dim=Dh, block_h=block_h)


def _pick_block_b(B, T, C, gd, block_h, itemsize,
                  budget_bytes=32 * 1024 * 1024, target_rows=1024):
    """Pick sequences-per-tile: ~1K projection rows, VMEM-budgeted, >=2 tiles when B >= 2."""
    def step_bytes(bb):
        m = bb * T
        wbytes = (3 * C * gd + gd * C) * itemsize + (3 * gd + C) * 4
        return (2 * 2 * m * C * itemsize            # double-buffered x + out blocks
                + m * C * 4                         # f32 accumulator (worst case: scratch)
                + 3 * m * gd * 4                    # q/k/v projection results (f32)
                + 2 * block_h * bb * T * T * 4      # per-head score matrices + exp temps
                + m * gd * 4                        # per-group y
                + 2 * wbytes)                       # double-buffered group weights / biases

    bb = max(1, min(B, max(1, target_rows // max(T, 1))))
    while bb > 1 and step_bytes(bb) > budget_bytes:
        bb -= 1
    while B % bb:
        bb -= 1
    if B >= 2 and B // bb < 2:
        # Keep >= 2 'parallel' batch tiles so v7x's two TensorCores both get work.
        bb = max(1, bb // 2)
        while B % bb:
            bb -= 1
    if T % 8 != 0:
        # Avoid merging (bb, T) -> M across a non-multiple-of-8 sublane dimension.
        bb = 1
    return bb, step_bytes(bb)


def self_attention(x, params, *, block_b=None, approx_recip=True):
    """x: (B, T, C).  params: output of fuse_self_attention_params.  Returns (B, T, C)."""
    B, T, C = x.shape
    wqkv, bqkv, wp_g, bp2 = params["wqkv"], params["bqkv"], params["wp"], params["bp"]
    block_h = params["block_h"]
    G, _, Cw, gd = wqkv.shape
    assert Cw == C, "embed_dim mismatch between x and fused params"
    # TODO(synk): pad C to a multiple of 128 (zero-padded weight rows/cols) to avoid masked
    # partial stores when embed_dim < 128; the test config (C=32) takes the slow-store path.

    compute_dtype = wqkv.dtype
    out_dtype = x.dtype
    xc = x if x.dtype == compute_dtype else x.astype(compute_dtype)
    itemsize = np.dtype(compute_dtype).itemsize

    if block_b is None:
        block_b, est_bytes = _pick_block_b(B, T, C, gd, block_h, itemsize)
    else:
        assert B % block_b == 0
        _, est_bytes = _pick_block_b(B, T, C, gd, block_h, itemsize, target_rows=block_b * T)

    vmem_limit = None
    if est_bytes > 12 * 1024 * 1024:
        # Raise the scoped VMEM limit past the v5e/v6e/v7x defaults (16/32/32 MiB) while staying
        # well under v7x's 64 MiB physical VMEM.
        vmem_limit = 48 * 1024 * 1024

    # For f32 outputs, accumulate directly into the resident output block (no scratch).
    acc_in_out = (out_dtype == jnp.float32)
    scratch_shapes = [] if acc_in_out else [pltpu.VMEM((block_b, T, C), jnp.float32)]

    grid = (B // block_b, G)
    kernel = partial(_attn_kernel, block_h=block_h, approx_recip=approx_recip)

    return pl.pallas_call(
        kernel,
        out_shape=jax.ShapeDtypeStruct((B, T, C), out_dtype),
        grid_spec=pltpu.PrefetchScalarGridSpec(
            num_scalar_prefetch=0,
            grid=grid,
            in_specs=[
                pl.BlockSpec((block_b, T, C), lambda i, g: (i, 0, 0)),       # x (resident over g)
                pl.BlockSpec((None, 3, C, gd), lambda i, g: (g, 0, 0, 0)),   # fused group Wqkv
                pl.BlockSpec((None, 3, 1, gd), lambda i, g: (g, 0, 0, 0)),   # fused group bqkv
                pl.BlockSpec((None, gd, C), lambda i, g: (g, 0, 0)),         # group rows of Wproj
                pl.BlockSpec((1, C), lambda i, g: (0, 0)),                   # proj bias
            ],
            out_specs=pl.BlockSpec((block_b, T, C), lambda i, g: (i, 0, 0)),
            scratch_shapes=scratch_shapes,
        ),
        compiler_params=pltpu.CompilerParams(
            dimension_semantics=("parallel", "arbitrary"),
            vmem_limit_bytes=vmem_limit),
    )(xc, wqkv, bqkv, wp_g, bp2)


def _reference(x, wq, bq, wk, bk, wv, bv, wp, bp, num_heads):
    B, T, C = x.shape
    Dh = C // num_heads
    q = (x @ wq + bq).reshape(B, T, num_heads, Dh).transpose(0, 2, 1, 3)
    k = (x @ wk + bk).reshape(B, T, num_heads, Dh).transpose(0, 2, 1, 3)
    v = (x @ wv + bv).reshape(B, T, num_heads, Dh).transpose(0, 2, 1, 3)
    att = jnp.einsum("bhtd,bhsd->bhts", q, k) / math.sqrt(Dh)
    att = jax.nn.softmax(att, axis=-1)
    y = jnp.einsum("bhts,bhsd->bhtd", att, v)
    y = y.transpose(0, 2, 1, 3).reshape(B, T, C)
    return y @ wp + bp


if __name__ == "__main__":
    # config: embed_dim=32, num_heads=4, attn_pdrop=resid_pdrop=0 (eval / identity dropout)
    B, T, C, H = 2, 8, 32, 4

    key = jax.random.PRNGKey(0)
    ks = jax.random.split(key, 9)
    x = jax.random.normal(ks[0], (B, T, C), dtype=jnp.float32)
    init = 1.0 / math.sqrt(C)  # nn.Linear-like uniform init scale
    wq, wk, wv, wp = (jax.random.uniform(k, (C, C), minval=-init, maxval=init,
                                         dtype=jnp.float32) for k in ks[1:5])
    bq, bk, bv, bp = (jax.random.uniform(k, (C,), minval=-init, maxval=init,
                                         dtype=jnp.float32) for k in ks[5:9])

    ref = _reference(x, wq, bq, wk, bk, wv, bv, wp, bp, H)

    # 1) Default path: bf16 MXU operands, approx (EUP) softmax reciprocal, auto head grouping.
    params = fuse_self_attention_params(wq, bq, wk, bk, wv, bv, wp, bp, num_heads=H)
    out = jax.block_until_ready(self_attention(x, params))
    assert out.shape == (B, T, C) and out.dtype == x.dtype
    assert jnp.allclose(out, ref, atol=5e-2, rtol=5e-2), "bf16 path mismatch vs reference"

    # 2) f32 compute + exact softmax reciprocal, forced multi-head-group path (block_h=2 -> G=2)
    #    to exercise the cross-group accumulation into the resident f32 output block.
    params_f32 = fuse_self_attention_params(wq, bq, wk, bk, wv, bv, wp, bp, num_heads=H,
                                            compute_dtype=jnp.float32, block_h=2)
    out_f32 = jax.block_until_ready(self_attention(x, params_f32, approx_recip=False))
    assert jnp.allclose(out_f32, ref, atol=1e-4, rtol=1e-4), "f32 path mismatch vs reference"

    # 3) bf16 input/output path (exercises the separate f32 accumulator scratch).
    out_bf16 = jax.block_until_ready(self_attention(x.astype(jnp.bfloat16), params))
    assert out_bf16.dtype == jnp.bfloat16
    assert jnp.allclose(out_bf16.astype(jnp.float32), ref, atol=1.5e-1, rtol=1.5e-1), \
        "bf16-output path mismatch vs reference"

    print("KERNEL_OK")
</pallas_src>

<mosaic_0001>
module attributes {stable_mosaic.version = 11 : i64} {
  func.func @_attn_kernel(%arg0: i32, %arg1: i32, %arg2: memref<1x8x32xbf16, #tpu.memory_space<vmem>>, %arg3: memref<1x3x32x32xbf16, #tpu.memory_space<vmem>>, %arg4: memref<1x3x1x32xf32, #tpu.memory_space<vmem>>, %arg5: memref<1x32x32xbf16, #tpu.memory_space<vmem>>, %arg6: memref<1x32xf32, #tpu.memory_space<vmem>>, %arg7: memref<1x8x32xf32, #tpu.memory_space<vmem>>) attributes {dimension_semantics = [#tpu.dimension_semantics<parallel>, #tpu.dimension_semantics<arbitrary>], iteration_bounds = array<i64: 2, 1>, scalar_prefetch = 0 : i64, scratch_operands = 0 : i64, tpu.core_type = #tpu.core_type<tc>, window_params = [{transform_indices = @transform_0, window_bounds = array<i64: 1, 8, 32>}, {transform_indices = @transform_1, window_bounds = array<i64: 1, 3, 32, 32>}, {transform_indices = @transform_2, window_bounds = array<i64: 1, 3, 1, 32>}, {transform_indices = @transform_3, window_bounds = array<i64: 1, 32, 32>}, {pipeline_mode = #tpu.pipeline_mode<synchronous>, transform_indices = @transform_4, window_bounds = array<i64: 1, 32>}, {transform_indices = @transform_5, window_bounds = array<i64: 1, 8, 32>}]} {
    %c0 = arith.constant 0 : index
    %c0_0 = arith.constant 0 : index
    %c0_1 = arith.constant 0 : index
    %0 = vector.load %arg2[%c0, %c0_0, %c0_1] : memref<1x8x32xbf16, #tpu.memory_space<vmem>>, vector<1x8x32xbf16>
    %1 = vector.shape_cast %0 : vector<1x8x32xbf16> to vector<8x32xbf16>
    %c0_2 = arith.constant 0 : index
    %c0_3 = arith.constant 0 : index
    %c0_4 = arith.constant 0 : index
    %c0_5 = arith.constant 0 : index
    %2 = vector.load %arg3[%c0_2, %c0_3, %c0_4, %c0_5] : memref<1x3x32x32xbf16, #tpu.memory_space<vmem>>, vector<1x1x32x32xbf16>
    %3 = vector.shape_cast %2 : vector<1x1x32x32xbf16> to vector<32x32xbf16>
    %cst = arith.constant dense<0.000000e+00> : vector<8x32xf32>
    %4 = tpu.matmul %1, %3, %cst {dimension_numbers = #tpu.dot_dimension_numbers<[1], [0], [0], [1], [0, 0, 1, 1], [], []>} : vector<8x32xbf16>, vector<32x32xbf16>, vector<8x32xf32> -> vector<8x32xf32>
    %c0_6 = arith.constant 0 : index
    %c0_7 = arith.constant 0 : index
    %c0_8 = arith.constant 0 : index
    %c0_9 = arith.constant 0 : index
    %5 = vector.load %arg4[%c0_6, %c0_7, %c0_8, %c0_9] : memref<1x3x1x32xf32, #tpu.memory_space<vmem>>, vector<1x1x1x32xf32>
    %6 = vector.shape_cast %5 : vector<1x1x1x32xf32> to vector<1x32xf32>
    %7 = vector.broadcast %6 : vector<1x32xf32> to vector<8x32xf32>
    %8 = arith.addf %4, %7 : vector<8x32xf32>
    %c0_10 = arith.constant 0 : index
    %c1 = arith.constant 1 : index
    %c0_11 = arith.constant 0 : index
    %c0_12 = arith.constant 0 : index
    %9 = vector.load %arg3[%c0_10, %c1, %c0_11, %c0_12] : memref<1x3x32x32xbf16, #tpu.memory_space<vmem>>, vector<1x1x32x32xbf16>
    %10 = vector.shape_cast %9 : vector<1x1x32x32xbf16> to vector<32x32xbf16>
    %cst_13 = arith.constant dense<0.000000e+00> : vector<8x32xf32>
    %11 = tpu.matmul %1, %10, %cst_13 {dimension_numbers = #tpu.dot_dimension_numbers<[1], [0], [0], [1], [0, 0, 1, 1], [], []>} : vector<8x32xbf16>, vector<32x32xbf16>, vector<8x32xf32> -> vector<8x32xf32>
    %c0_14 = arith.constant 0 : index
    %c1_15 = arith.constant 1 : index
    %c0_16 = arith.constant 0 : index
    %c0_17 = arith.constant 0 : index
    %12 = vector.load %arg4[%c0_14, %c1_15, %c0_16, %c0_17] : memref<1x3x1x32xf32, #tpu.memory_space<vmem>>, vector<1x1x1x32xf32>
    %13 = vector.shape_cast %12 : vector<1x1x1x32xf32> to vector<1x32xf32>
    %14 = vector.broadcast %13 : vector<1x32xf32> to vector<8x32xf32>
    %15 = arith.addf %11, %14 : vector<8x32xf32>
    %c0_18 = arith.constant 0 : index
    %c2 = arith.constant 2 : index
    %c0_19 = arith.constant 0 : index
    %c0_20 = arith.constant 0 : index
    %16 = vector.load %arg3[%c0_18, %c2, %c0_19, %c0_20] : memref<1x3x32x32xbf16, #tpu.memory_space<vmem>>, vector<1x1x32x32xbf16>
    %17 = vector.shape_cast %16 : vector<1x1x32x32xbf16> to vector<32x32xbf16>
    %cst_21 = arith.constant dense<0.000000e+00> : vector<8x32xf32>
    %18 = tpu.matmul %1, %17, %cst_21 {dimension_numbers = #tpu.dot_dimension_numbers<[1], [0], [0], [1], [0, 0, 1, 1], [], []>} : vector<8x32xbf16>, vector<32x32xbf16>, vector<8x32xf32> -> vector<8x32xf32>
    %c0_22 = arith.constant 0 : index
    %c2_23 = arith.constant 2 : index
    %c0_24 = arith.constant 0 : index
    %c0_25 = arith.constant 0 : index
    %19 = vector.load %arg4[%c0_22, %c2_23, %c0_24, %c0_25] : memref<1x3x1x32xf32, #tpu.memory_space<vmem>>, vector<1x1x1x32xf32>
    %20 = vector.shape_cast %19 : vector<1x1x1x32xf32> to vector<1x32xf32>
    %21 = vector.broadcast %20 : vector<1x32xf32> to vector<8x32xf32>
    %22 = arith.addf %18, %21 : vector<8x32xf32>
    %23 = vector.extract_strided_slice %8 {offsets = [0, 0], sizes = [8, 8], strides = [1, 1]} : vector<8x32xf32> to vector<8x8xf32>
    %24 = arith.truncf %23 : vector<8x8xf32> to vector<8x8xbf16>
    %25 = vector.shape_cast %24 : vector<8x8xbf16> to vector<1x8x8xbf16>
    %26 = vector.extract_strided_slice %15 {offsets = [0, 0], sizes = [8, 8], strides = [1, 1]} : vector<8x32xf32> to vector<8x8xf32>
    %27 = arith.truncf %26 : vector<8x8xf32> to vector<8x8xbf16>
    %28 = vector.shape_cast %27 : vector<8x8xbf16> to vector<1x8x8xbf16>
    %29 = vector.extract_strided_slice %22 {offsets = [0, 0], sizes = [8, 8], strides = [1, 1]} : vector<8x32xf32> to vector<8x8xf32>
    %30 = arith.truncf %29 : vector<8x8xf32> to vector<8x8xbf16>
    %31 = vector.shape_cast %30 : vector<8x8xbf16> to vector<1x8x8xbf16>
    "tpu.trace_start"() <{level = 10 : i32, message = "btd,bsd->bts"}> : () -> ()
    %cst_26 = arith.constant dense<0.000000e+00> : vector<1x8x8xf32>
    %32 = tpu.matmul %25, %28, %cst_26 {dimension_numbers = #tpu.dot_dimension_numbers<[2], [2], [1], [1], [0, 0, 0, 1, 1, 1], [0], [0]>} : vector<1x8x8xbf16>, vector<1x8x8xbf16>, vector<1x8x8xf32> -> vector<1x8x8xf32>
    "tpu.trace_stop"() : () -> ()
    %cst_27 = arith.constant dense<0xFF800000> : vector<1x8xf32>
    %33 = vector.multi_reduction <maximumf>, %32, %cst_27 [2] : vector<1x8x8xf32> to vector<1x8xf32>
    %34 = vector.shape_cast %33 : vector<1x8xf32> to vector<1x8x1xf32>
    %35 = vector.broadcast %34 : vector<1x8x1xf32> to vector<1x8x8xf32>
    %36 = arith.subf %32, %35 : vector<1x8x8xf32>
    %37 = math.exp %36 : vector<1x8x8xf32>
    %cst_28 = arith.constant dense<0.000000e+00> : vector<1x8xf32>
    %38 = vector.multi_reduction <add>, %37, %cst_28 [2] : vector<1x8x8xf32> to vector<1x8xf32>
    %39 = vector.shape_cast %38 : vector<1x8xf32> to vector<1x8x1xf32>
    %40 = tpu.reciprocal %39 {approx = true} : vector<1x8x1xf32> -> vector<1x8x1xf32>
    %41 = vector.broadcast %40 : vector<1x8x1xf32> to vector<1x8x8xf32>
    %42 = arith.mulf %37, %41 : vector<1x8x8xf32>
    %43 = arith.truncf %42 : vector<1x8x8xf32> to vector<1x8x8xbf16>
    "tpu.trace_start"() <{level = 10 : i32, message = "bts,bsd->btd"}> : () -> ()
    %cst_29 = arith.constant dense<0.000000e+00> : vector<1x8x8xf32>
    %44 = tpu.matmul %43, %31, %cst_29 {dimension_numbers = #tpu.dot_dimension_numbers<[2], [1], [1], [2], [0, 0, 0, 1, 1, 2], [0], [0]>} : vector<1x8x8xbf16>, vector<1x8x8xbf16>, vector<1x8x8xf32> -> vector<1x8x8xf32>
    "tpu.trace_stop"() : () -> ()
    %45 = vector.extract_strided_slice %8 {offsets = [0, 8], sizes = [8, 8], strides = [1, 1]} : vector<8x32xf32> to vector<8x8xf32>
    %46 = arith.truncf %45 : vector<8x8xf32> to vector<8x8xbf16>
    %47 = vector.shape_cast %46 : vector<8x8xbf16> to vector<1x8x8xbf16>
    %48 = vector.extract_strided_slice %15 {offsets = [0, 8], sizes = [8, 8], strides = [1, 1]} : vector<8x32xf32> to vector<8x8xf32>
    %49 = arith.truncf %48 : vector<8x8xf32> to vector<8x8xbf16>
    %50 = vector.shape_cast %49 : vector<8x8xbf16> to vector<1x8x8xbf16>
    %51 = vector.extract_strided_slice %22 {offsets = [0, 8], sizes = [8, 8], strides = [1, 1]} : vector<8x32xf32> to vector<8x8xf32>
    %52 = arith.truncf %51 : vector<8x8xf32> to vector<8x8xbf16>
    %53 = vector.shape_cast %52 : vector<8x8xbf16> to vector<1x8x8xbf16>
    "tpu.trace_start"() <{level = 10 : i32, message = "btd,bsd->bts"}> : () -> ()
    %cst_30 = arith.constant dense<0.000000e+00> : vector<1x8x8xf32>
    %54 = tpu.matmul %47, %50, %cst_30 {dimension_numbers = #tpu.dot_dimension_numbers<[2], [2], [1], [1], [0, 0, 0, 1, 1, 1], [0], [0]>} : vector<1x8x8xbf16>, vector<1x8x8xbf16>, vector<1x8x8xf32> -> vector<1x8x8xf32>
    "tpu.trace_stop"() : () -> ()
    %cst_31 = arith.constant dense<0xFF800000> : vector<1x8xf32>
    %55 = vector.multi_reduction <maximumf>, %54, %cst_31 [2] : vector<1x8x8xf32> to vector<1x8xf32>
    %56 = vector.shape_cast %55 : vector<1x8xf32> to vector<1x8x1xf32>
    %57 = vector.broadcast %56 : vector<1x8x1xf32> to vector<1x8x8xf32>
    %58 = arith.subf %54, %57 : vector<1x8x8xf32>
    %59 = math.exp %58 : vector<1x8x8xf32>
    %cst_32 = arith.constant dense<0.000000e+00> : vector<1x8xf32>
    %60 = vector.multi_reduction <add>, %59, %cst_32 [2] : vector<1x8x8xf32> to vector<1x8xf32>
    %61 = vector.shape_cast %60 : vector<1x8xf32> to vector<1x8x1xf32>
    %62 = tpu.reciprocal %61 {approx = true} : vector<1x8x1xf32> -> vector<1x8x1xf32>
    %63 = vector.broadcast %62 : vector<1x8x1xf32> to vector<1x8x8xf32>
    %64 = arith.mulf %59, %63 : vector<1x8x8xf32>
    %65 = arith.truncf %64 : vector<1x8x8xf32> to vector<1x8x8xbf16>
    "tpu.trace_start"() <{level = 10 : i32, message = "bts,bsd->btd"}> : () -> ()
    %cst_33 = arith.constant dense<0.000000e+00> : vector<1x8x8xf32>
    %66 = tpu.matmul %65, %53, %cst_33 {dimension_numbers = #tpu.dot_dimension_numbers<[2], [1], [1], [2], [0, 0, 0, 1, 1, 2], [0], [0]>} : vector<1x8x8xbf16>, vector<1x8x8xbf16>, vector<1x8x8xf32> -> vector<1x8x8xf32>
    "tpu.trace_stop"() : () -> ()
    %67 = vector.extract_strided_slice %8 {offsets = [0, 16], sizes = [8, 8], strides = [1, 1]} : vector<8x32xf32> to vector<8x8xf32>
    %68 = arith.truncf %67 : vector<8x8xf32> to vector<8x8xbf16>
    %69 = vector.shape_cast %68 : vector<8x8xbf16> to vector<1x8x8xbf16>
    %70 = vector.extract_strided_slice %15 {offsets = [0, 16], sizes = [8, 8], strides = [1, 1]} : vector<8x32xf32> to vector<8x8xf32>
    %71 = arith.truncf %70 : vector<8x8xf32> to vector<8x8xbf16>
    %72 = vector.shape_cast %71 : vector<8x8xbf16> to vector<1x8x8xbf16>
    %73 = vector.extract_strided_slice %22 {offsets = [0, 16], sizes = [8, 8], strides = [1, 1]} : vector<8x32xf32> to vector<8x8xf32>
    %74 = arith.truncf %73 : vector<8x8xf32> to vector<8x8xbf16>
    %75 = vector.shape_cast %74 : vector<8x8xbf16> to vector<1x8x8xbf16>
    "tpu.trace_start"() <{level = 10 : i32, message = "btd,bsd->bts"}> : () -> ()
    %cst_34 = arith.constant dense<0.000000e+00> : vector<1x8x8xf32>
    %76 = tpu.matmul %69, %72, %cst_34 {dimension_numbers = #tpu.dot_dimension_numbers<[2], [2], [1], [1], [0, 0, 0, 1, 1, 1], [0], [0]>} : vector<1x8x8xbf16>, vector<1x8x8xbf16>, vector<1x8x8xf32> -> vector<1x8x8xf32>
    "tpu.trace_stop"() : () -> ()
    %cst_35 = arith.constant dense<0xFF800000> : vector<1x8xf32>
    %77 = vector.multi_reduction <maximumf>, %76, %cst_35 [2] : vector<1x8x8xf32> to vector<1x8xf32>
    %78 = vector.shape_cast %77 : vector<1x8xf32> to vector<1x8x1xf32>
    %79 = vector.broadcast %78 : vector<1x8x1xf32> to vector<1x8x8xf32>
    %80 = arith.subf %76, %79 : vector<1x8x8xf32>
    %81 = math.exp %80 : vector<1x8x8xf32>
    %cst_36 = arith.constant dense<0.000000e+00> : vector<1x8xf32>
    %82 = vector.multi_reduction <add>, %81, %cst_36 [2] : vector<1x8x8xf32> to vector<1x8xf32>
    %83 = vector.shape_cast %82 : vector<1x8xf32> to vector<1x8x1xf32>
    %84 = tpu.reciprocal %83 {approx = true} : vector<1x8x1xf32> -> vector<1x8x1xf32>
    %85 = vector.broadcast %84 : vector<1x8x1xf32> to vector<1x8x8xf32>
    %86 = arith.mulf %81, %85 : vector<1x8x8xf32>
    %87 = arith.truncf %86 : vector<1x8x8xf32> to vector<1x8x8xbf16>
    "tpu.trace_start"() <{level = 10 : i32, message = "bts,bsd->btd"}> : () -> ()
    %cst_37 = arith.constant dense<0.000000e+00> : vector<1x8x8xf32>
    %88 = tpu.matmul %87, %75, %cst_37 {dimension_numbers = #tpu.dot_dimension_numbers<[2], [1], [1], [2], [0, 0, 0, 1, 1, 2], [0], [0]>} : vector<1x8x8xbf16>, vector<1x8x8xbf16>, vector<1x8x8xf32> -> vector<1x8x8xf32>
    "tpu.trace_stop"() : () -> ()
    %89 = vector.extract_strided_slice %8 {offsets = [0, 24], sizes = [8, 8], strides = [1, 1]} : vector<8x32xf32> to vector<8x8xf32>
    %90 = arith.truncf %89 : vector<8x8xf32> to vector<8x8xbf16>
    %91 = vector.shape_cast %90 : vector<8x8xbf16> to vector<1x8x8xbf16>
    %92 = vector.extract_strided_slice %15 {offsets = [0, 24], sizes = [8, 8], strides = [1, 1]} : vector<8x32xf32> to vector<8x8xf32>
    %93 = arith.truncf %92 : vector<8x8xf32> to vector<8x8xbf16>
    %94 = vector.shape_cast %93 : vector<8x8xbf16> to vector<1x8x8xbf16>
    %95 = vector.extract_strided_slice %22 {offsets = [0, 24], sizes = [8, 8], strides = [1, 1]} : vector<8x32xf32> to vector<8x8xf32>
    %96 = arith.truncf %95 : vector<8x8xf32> to vector<8x8xbf16>
    %97 = vector.shape_cast %96 : vector<8x8xbf16> to vector<1x8x8xbf16>
    "tpu.trace_start"() <{level = 10 : i32, message = "btd,bsd->bts"}> : () -> ()
    %cst_38 = arith.constant dense<0.000000e+00> : vector<1x8x8xf32>
    %98 = tpu.matmul %91, %94, %cst_38 {dimension_numbers = #tpu.dot_dimension_numbers<[2], [2], [1], [1], [0, 0, 0, 1, 1, 1], [0], [0]>} : vector<1x8x8xbf16>, vector<1x8x8xbf16>, vector<1x8x8xf32> -> vector<1x8x8xf32>
    "tpu.trace_stop"() : () -> ()
    %cst_39 = arith.constant dense<0xFF800000> : vector<1x8xf32>
    %99 = vector.multi_reduction <maximumf>, %98, %cst_39 [2] : vector<1x8x8xf32> to vector<1x8xf32>
    %100 = vector.shape_cast %99 : vector<1x8xf32> to vector<1x8x1xf32>
    %101 = vector.broadcast %100 : vector<1x8x1xf32> to vector<1x8x8xf32>
    %102 = arith.subf %98, %101 : vector<1x8x8xf32>
    %103 = math.exp %102 : vector<1x8x8xf32>
    %cst_40 = arith.constant dense<0.000000e+00> : vector<1x8xf32>
    %104 = vector.multi_reduction <add>, %103, %cst_40 [2] : vector<1x8x8xf32> to vector<1x8xf32>
    %105 = vector.shape_cast %104 : vector<1x8xf32> to vector<1x8x1xf32>
    %106 = tpu.reciprocal %105 {approx = true} : vector<1x8x1xf32> -> vector<1x8x1xf32>
    %107 = vector.broadcast %106 : vector<1x8x1xf32> to vector<1x8x8xf32>
    %108 = arith.mulf %103, %107 : vector<1x8x8xf32>
    %109 = arith.truncf %108 : vector<1x8x8xf32> to vector<1x8x8xbf16>
    "tpu.trace_start"() <{level = 10 : i32, message = "bts,bsd->btd"}> : () -> ()
    %cst_41 = arith.constant dense<0.000000e+00> : vector<1x8x8xf32>
    %110 = tpu.matmul %109, %97, %cst_41 {dimension_numbers = #tpu.dot_dimension_numbers<[2], [1], [1], [2], [0, 0, 0, 1, 1, 2], [0], [0]>} : vector<1x8x8xbf16>, vector<1x8x8xbf16>, vector<1x8x8xf32> -> vector<1x8x8xf32>
    "tpu.trace_stop"() : () -> ()
    %111 = tpu.concatenate %44, %66, %88, %110 in 2 : vector<1x8x8xf32>, vector<1x8x8xf32>, vector<1x8x8xf32>, vector<1x8x8xf32> -> vector<1x8x32xf32>
    %112 = vector.shape_cast %111 : vector<1x8x32xf32> to vector<8x32xf32>
    %113 = arith.truncf %112 : vector<8x32xf32> to vector<8x32xbf16>
    %c0_42 = arith.constant 0 : index
    %c0_43 = arith.constant 0 : index
    %c0_44 = arith.constant 0 : index
    %114 = vector.load %arg5[%c0_42, %c0_43, %c0_44] : memref<1x32x32xbf16, #tpu.memory_space<vmem>>, vector<1x32x32xbf16>
    %115 = vector.shape_cast %114 : vector<1x32x32xbf16> to vector<32x32xbf16>
    %cst_45 = arith.constant dense<0.000000e+00> : vector<8x32xf32>
    %116 = tpu.matmul %113, %115, %cst_45 {dimension_numbers = #tpu.dot_dimension_numbers<[1], [0], [0], [1], [0, 0, 1, 1], [], []>} : vector<8x32xbf16>, vector<32x32xbf16>, vector<8x32xf32> -> vector<8x32xf32>
    %117 = vector.shape_cast %116 : vector<8x32xf32> to vector<1x8x32xf32>
    %c0_i32 = arith.constant 0 : i32
    %118 = arith.cmpi eq, %arg1, %c0_i32 : i32
    %119 = arith.extui %118 : i1 to i32
    %c0_i32_46 = arith.constant 0 : i32
    %120 = arith.cmpi ne, %119, %c0_i32_46 : i32
    scf.if %120 {
      %cst_55 = arith.constant 0.000000e+00 : f32
      %127 = vector.broadcast %cst_55 : f32 to vector<1x8x32xf32>
      %c0_56 = arith.constant 0 : index
      %c0_57 = arith.constant 0 : index
      %c0_58 = arith.constant 0 : index
      %128 = vector.load %arg7[%c0_56, %c0_57, %c0_58] : memref<1x8x32xf32, #tpu.memory_space<vmem>>, vector<1x8x32xf32>
      tpu.vector_store %arg7[%c0_56, %c0_57, %c0_58], %127 {strides = array<i32>} : memref<1x8x32xf32, #tpu.memory_space<vmem>>, vector<1x8x32xf32>,
    } else {
    }
    %c0_47 = arith.constant 0 : index
    %c0_48 = arith.constant 0 : index
    %c0_49 = arith.constant 0 : index
    %121 = vector.load %arg7[%c0_47, %c0_48, %c0_49] : memref<1x8x32xf32, #tpu.memory_space<vmem>>, vector<1x8x32xf32>
    %122 = arith.addf %121, %117 : vector<1x8x32xf32>
    %c0_50 = arith.constant 0 : index
    %c0_51 = arith.constant 0 : index
    %c0_52 = arith.constant 0 : index
    %123 = vector.load %arg7[%c0_50, %c0_51, %c0_52] : memref<1x8x32xf32, #tpu.memory_space<vmem>>, vector<1x8x32xf32>
    tpu.vector_store %arg7[%c0_50, %c0_51, %c0_52], %122 {strides = array<i32>} : memref<1x8x32xf32, #tpu.memory_space<vmem>>, vector<1x8x32xf32>,
    %c0_i32_53 = arith.constant 0 : i32
    %124 = arith.cmpi eq, %arg1, %c0_i32_53 : i32
    %125 = arith.extui %124 : i1 to i32
    %c0_i32_54 = arith.constant 0 : i32
    %126 = arith.cmpi ne, %125, %c0_i32_54 : i32
    scf.if %126 {
      %c0_55 = arith.constant 0 : index
      %c0_56 = arith.constant 0 : index
      %c0_57 = arith.constant 0 : index
      %127 = vector.load %arg7[%c0_55, %c0_56, %c0_57] : memref<1x8x32xf32, #tpu.memory_space<vmem>>, vector<1x8x32xf32>
      %c0_58 = arith.constant 0 : index
      %c0_59 = arith.constant 0 : index
      %128 = vector.load %arg6[%c0_58, %c0_59] : memref<1x32xf32, #tpu.memory_space<vmem>>, vector<1x32xf32>
      %129 = vector.shape_cast %128 : vector<1x32xf32> to vector<1x1x32xf32>
      %130 = vector.broadcast %129 : vector<1x1x32xf32> to vector<1x8x32xf32>
      %131 = arith.addf %127, %130 : vector<1x8x32xf32>
      %c0_60 = arith.constant 0 : index
      %c0_61 = arith.constant 0 : index
      %c0_62 = arith.constant 0 : index
      %132 = vector.load %arg7[%c0_60, %c0_61, %c0_62] : memref<1x8x32xf32, #tpu.memory_space<vmem>>, vector<1x8x32xf32>
      tpu.vector_store %arg7[%c0_60, %c0_61, %c0_62], %131 {strides = array<i32>} : memref<1x8x32xf32, #tpu.memory_space<vmem>>, vector<1x8x32xf32>,
    } else {
    }
    return
  }
  func.func @transform_0(%arg0: i32, %arg1: i32) -> (i32, i32, i32) {
    %c0_i32 = arith.constant 0 : i32
    %c0_i32_0 = arith.constant 0 : i32
    %c0_i32_1 = arith.constant 0 : i32
    return %arg0, %c0_i32, %c0_i32_0 : i32, i32, i32
  }
  func.func @transform_1(%arg0: i32, %arg1: i32) -> (i32, i32, i32, i32) {
    %c0_i32 = arith.constant 0 : i32
    %c0_i32_0 = arith.constant 0 : i32
    %c0_i32_1 = arith.constant 0 : i32
    %c0_i32_2 = arith.constant 0 : i32
    return %arg1, %c0_i32, %c0_i32_0, %c0_i32_1 : i32, i32, i32, i32
  }
  func.func @transform_2(%arg0: i32, %arg1: i32) -> (i32, i32, i32, i32) {
    %c0_i32 = arith.constant 0 : i32
    %c0_i32_0 = arith.constant 0 : i32
    %c0_i32_1 = arith.constant 0 : i32
    %c0_i32_2 = arith.constant 0 : i32
    return %arg1, %c0_i32, %c0_i32_0, %c0_i32_1 : i32, i32, i32, i32
  }
  func.func @transform_3(%arg0: i32, %arg1: i32) -> (i32, i32, i32) {
    %c0_i32 = arith.constant 0 : i32
    %c0_i32_0 = arith.constant 0 : i32
    %c0_i32_1 = arith.constant 0 : i32
    return %arg1, %c0_i32, %c0_i32_0 : i32, i32, i32
  }
  func.func @transform_4(%arg0: i32, %arg1: i32) -> (i32, i32) {
    %c0_i32 = arith.constant 0 : i32
    %c0_i32_0 = arith.constant 0 : i32
    %c0_i32_1 = arith.constant 0 : i32
    return %c0_i32, %c0_i32_0 : i32, i32
  }
  func.func @transform_5(%arg0: i32, %arg1: i32) -> (i32, i32, i32) {
    %c0_i32 = arith.constant 0 : i32
    %c0_i32_0 = arith.constant 0 : i32
    %c0_i32_1 = arith.constant 0 : i32
    return %arg0, %c0_i32, %c0_i32_0 : i32, i32, i32
  }
}

</mosaic_0001>

<llo_original>
// kernel: tpu_custom_call.1
$region0: #{tpu_custom_call.1}
  #allocation0 [shape = 'u32[]', space=smem, size = 0x4, offset = 0x4, fixed_abs, tag = 'smem constant byte address 0x4 - core index']
  #allocation1 [shape = 'u32[72,128]{1,0:T(1,128)}', space=vmem, size = 0x9000, scoped, tag = 'internal scratch']
  %s0 = inlined_call_operand.hbm [shape: bf16[2,8,32], index: 0, kind: input, shape index: {}]
  %s1 = inlined_call_operand.hbm [shape: bf16[1,3,32,32], index: 1, kind: input, shape index: {}]
  %s2 = inlined_call_operand.hbm [shape: f32[1,3,1,32], index: 2, kind: input, shape index: {}]
  %s3 = inlined_call_operand.hbm [shape: bf16[1,32,32], index: 3, kind: input, shape index: {}]
  %s4 = inlined_call_operand.vmem [shape: f32[1,32], index: 4, kind: input, shape index: {}]
  %s5 = inlined_call_operand.hbm [shape: f32[2,8,32], index: 5, kind: output, shape index: {}]
  %s6 = sld [smem:[#allocation0]]
  $region77: #{tpu_custom_call.1} parent=0
    _
  %s8 = ssub.s32 1, %s6
  %s9 = scalar_select 0, %s8, %s6
  $region1: #{tpu_custom_call.1} parent=0
    #allocation2 [shape = 'u8[4096]{0}', space=vmem, size = 0x1000, scoped, tag = 'input window, operand 0']
    #allocation3 [shape = 's32[2]{0}', space=sflag, size = 0x8, scoped, tag = 'scoped memory for tpu_custom_call.1']
    #allocation4 [shape = 's32[2]{0}', space=sflag, size = 0x8, scoped, tag = 'scoped memory for tpu_custom_call.1']
    #allocation5 [shape = 'u8[24576]{0}', space=vmem, size = 0x6000, scoped, tag = 'input window, operand 1, single buffered']
    #allocation6 [shape = 's32[1]{0}', space=sflag, size = 0x4, scoped, tag = 'scoped memory for tpu_custom_call.1']
    #allocation7 [shape = 'u8[1536]{0}', space=vmem, size = 0x800, scoped, tag = 'input window, operand 2, single buffered']
    #allocation8 [shape = 'u8[8192]{0}', space=vmem, size = 0x2000, scoped, tag = 'input window, operand 3, single buffered']
    #allocation9 [shape = 's32[1]{0}', space=sflag, size = 0x4, scoped, tag = 'scoped memory for tpu_custom_call.1']
    #allocation10 [shape = 'u8[8192]{0}', space=vmem, size = 0x2000, scoped, tag = 'output window, operand 0']
    %10 = vsyncpa [#allocation3], 0
    %s11 = scalar_lea.sflag [#allocation3], 1
    %12 = vsyncpa %s11, 0
    %13 = vsyncpa [#allocation6], 0
    %14 = vsyncpa [#allocation9], 0
    %15 = vsyncpa [#allocation4], 0
    %s16 = scalar_lea.sflag [#allocation4], 1
    %17 = vsyncpa %s16, 0
    loop: start=0, step=1, limit=4
    $region2: #{tpu_custom_call.1} parent=1 // loop_pre_header
      _
    $region3: #{tpu_custom_call.1} parent=1 // loop_header
      %s19 = sphi 0, %s23
      %p20 = scmp.ge.s32.totalorder %s19, 4
      %s26 = sphi 0, %s38
      %s27 = sphi 0, %s34
      %s28 = sphi 0, %s26
      %s29 = sphi 0, %s27
      %s30 = sphi 0, %s28
      %s31 = sphi 0, %s29
      %s41 = sphi 0, %s43
      %s44 = sphi 0, %s41
      %s45 = sphi 0, %s44
      %s61 = sphi 0, %s45
      %s67 = sphi 0, %s69
      %s70 = sphi 0, %s67
      %s71 = sphi 0, %s70
      %s87 = sphi 0, %s71
      %s93 = sphi 0, %s95
      %s96 = sphi 0, %s93
      %s97 = sphi 0, %s96
      %s113 = sphi 0, %s97
      %s119 = sphi 0, %s121
      %s122 = sphi 0, %s119
      %s123 = sphi 0, %s122
      %s139 = sphi 0, %s123
      %s143 = sphi 0, %s143
      %s145 = sphi 0, %s143
      %s146 = sphi 0, %s145
      %s160 = sphi 0, %s146
      %s166 = sphi 0, %s168
      %s169 = sphi 0, %s166
      %s170 = sphi 0, %s169
      %s186 = sphi 0, %s170
    $region4: #{tpu_custom_call.1} parent=1 // loop_header_branch
      %22 = sbr.rel (%p20) target = $region8
    $region5: #{tpu_custom_call.1} parent=1 // loop_body
      %s24 = ssub.s32 %s19, 1
      %s25 = ssub.s32 %s19, 2
      %s32 = sadd.s32 1, %s27
      %p33 = scmp.ge.s32.totalorder %s32, 1
      %s34 = scalar_select %p33, 0, %s32
      %s35 = sadd.s32 1, %s26
      %s36 = scalar_select %p33, %s35, %s26
      %p37 = scmp.ge.s32.totalorder %s36, 2
      %s38 = scalar_select %p37, 0, %s36
      %s39 = ssub.s32 %s26, %s38
      %p40 = scmp.eq.s32.totalorder %s39, 0
      %s42 = sadd.s32 %s41, 1
      %s43 = scalar_select %p40, %s41, %s42
      %p46 = pneg %p40
      %p47 = scmp.eq.s32.totalorder %s19, 1
      %p48 = por %p46, %p47
      %p49 = scmp.ne.s32.totalorder %s41, %s44
      %p50 = scmp.eq.s32.totalorder %s19, 0
      %p51 = por %p49, %p50
      %p52 = scmp.ne.s32.totalorder %s41, %s44
      %p53 = scmp.eq.s32.totalorder %s24, 1
      %p54 = por %p52, %p53
      %p55 = scmp.ne.s32.totalorder %s44, %s45
      %p56 = scmp.eq.s32.totalorder %s24, 0
      %p57 = por %p55, %p56
      %p58 = scmp.ne.s32.totalorder %s44, %s45
      %p59 = scmp.eq.s32.totalorder %s25, 1
      %p60 = por %p58, %p59
      %p62 = scmp.ne.s32.totalorder %s45, %s61
      %p63 = scmp.eq.s32.totalorder %s25, 0
      %p64 = por %p62, %p63
      %s65 = ssub.s32 %s27, %s34
      %p66 = scmp.eq.s32.totalorder %s65, 0
      %s68 = sadd.s32 %s67, 1
      %s69 = scalar_select %p66, %s67, %s68
      %p72 = pneg %p66
      %p73 = scmp.eq.s32.totalorder %s19, 1
      %p74 = por %p72, %p73
      %p75 = scmp.ne.s32.totalorder %s67, %s70
      %p76 = scmp.eq.s32.totalorder %s19, 0
      %p77 = por %p75, %p76
      %p78 = scmp.ne.s32.totalorder %s67, %s70
      %p79 = scmp.eq.s32.totalorder %s24, 1
      %p80 = por %p78, %p79
      %p81 = scmp.ne.s32.totalorder %s70, %s71
      %p82 = scmp.eq.s32.totalorder %s24, 0
      %p83 = por %p81, %p82
      %p84 = scmp.ne.s32.totalorder %s70, %s71
      %p85 = scmp.eq.s32.totalorder %s25, 1
      %p86 = por %p84, %p85
      %p88 = scmp.ne.s32.totalorder %s71, %s87
      %p89 = scmp.eq.s32.totalorder %s25, 0
      %p90 = por %p88, %p89
      %s91 = ssub.s32 %s27, %s34
      %p92 = scmp.eq.s32.totalorder %s91, 0
      %s94 = sadd.s32 %s93, 1
      %s95 = scalar_select %p92, %s93, %s94
      %p98 = pneg %p92
      %p99 = scmp.eq.s32.totalorder %s19, 1
      %p100 = por %p98, %p99
      %p101 = scmp.ne.s32.totalorder %s93, %s96
      %p102 = scmp.eq.s32.totalorder %s19, 0
      %p103 = por %p101, %p102
      %p104 = scmp.ne.s32.totalorder %s93, %s96
      %p105 = scmp.eq.s32.totalorder %s24, 1
      %p106 = por %p104, %p105
      %p107 = scmp.ne.s32.totalorder %s96, %s97
      %p108 = scmp.eq.s32.totalorder %s24, 0
      %p109 = por %p107, %p108
      %p110 = scmp.ne.s32.totalorder %s96, %s97
      %p111 = scmp.eq.s32.totalorder %s25, 1
      %p112 = por %p110, %p111
      %p114 = scmp.ne.s32.totalorder %s97, %s113
      %p115 = scmp.eq.s32.totalorder %s25, 0
      %p116 = por %p114, %p115
      %s117 = ssub.s32 %s27, %s34
      %p118 = scmp.eq.s32.totalorder %s117, 0
      %s120 = sadd.s32 %s119, 1
      %s121 = scalar_select %p118, %s119, %s120
      %p124 = pneg %p118
      %p125 = scmp.eq.s32.totalorder %s19, 1
      %p126 = por %p124, %p125
      %p127 = scmp.ne.s32.totalorder %s119, %s122
      %p128 = scmp.eq.s32.totalorder %s19, 0
      %p129 = por %p127, %p128
      %p130 = scmp.ne.s32.totalorder %s119, %s122
      %p131 = scmp.eq.s32.totalorder %s24, 1
      %p132 = por %p130, %p131
      %p133 = scmp.ne.s32.totalorder %s122, %s123
      %p134 = scmp.eq.s32.totalorder %s24, 0
      %p135 = por %p133, %p134
      %p136 = scmp.ne.s32.totalorder %s122, %s123
      %p137 = scmp.eq.s32.totalorder %s25, 1
      %p138 = por %p136, %p137
      %p140 = scmp.ne.s32.totalorder %s123, %s139
      %p141 = scmp.eq.s32.totalorder %s25, 0
      %p142 = por %p140, %p141
      %s144 = sadd.s32 %s143, 1
      %p147 = scmp.eq.s32.totalorder %s19, 1
      %p148 = scmp.ne.s32.totalorder %s143, %s145
      %p149 = scmp.eq.s32.totalorder %s19, 0
      %p150 = por %p148, %p149
      %p151 = scmp.ne.s32.totalorder %s143, %s145
      %p152 = scmp.eq.s32.totalorder %s24, 1
      %p153 = por %p151, %p152
      %p154 = scmp.ne.s32.totalorder %s145, %s146
      %p155 = scmp.eq.s32.totalorder %s24, 0
      %p156 = por %p154, %p155
      %p157 = scmp.ne.s32.totalorder %s145, %s146
      %p158 = scmp.eq.s32.totalorder %s25, 1
      %p159 = por %p157, %p158
      %p161 = scmp.ne.s32.totalorder %s146, %s160
      %p162 = scmp.eq.s32.totalorder %s25, 0
      %p163 = por %p161, %p162
      %s164 = ssub.s32 %s26, %s38
      %p165 = scmp.eq.s32.totalorder %s164, 0
      %s167 = sadd.s32 %s166, 1
      %s168 = scalar_select %p165, %s166, %s167
      %p171 = pneg %p165
      %p172 = scmp.eq.s32.totalorder %s19, 1
      %p173 = por %p171, %p172
      %p174 = scmp.ne.s32.totalorder %s166, %s169
      %p175 = scmp.eq.s32.totalorder %s19, 0
      %p176 = por %p174, %p175
      %p177 = scmp.ne.s32.totalorder %s166, %s169
      %p178 = scmp.eq.s32.totalorder %s24, 1
      %p179 = por %p177, %p178
      %p180 = scmp.ne.s32.totalorder %s169, %s170
      %p181 = scmp.eq.s32.totalorder %s24, 0
      %p182 = por %p180, %p181
      %p183 = scmp.ne.s32.totalorder %s169, %s170
      %p184 = scmp.eq.s32.totalorder %s25, 1
      %p185 = por %p183, %p184
      %p187 = scmp.ne.s32.totalorder %s170, %s186
      %p188 = scmp.eq.s32.totalorder %s25, 0
      %p189 = por %p187, %p188
      %p190 = scmp.le.s32.totalorder 1, %s19
      %p191 = scmp.lt.s32.totalorder %s19, 3
      %p192 = pnand %p190, %p191
      %p193 = pneg %p192
      // Predicated region
      $region9: #{tpu_custom_call.1} parent=5 // pred_check
        _
      $region10: #{tpu_custom_call.1} parent=5 // pred_check_branch
        %195 = sbr.rel (%p192) target = $region12
      $region11: #{tpu_custom_call.1} parent=5 // pred_region
        %s196 = ssub.s32 %s19, 1
        // Predicated region
        $region13: #{tpu_custom_call.1} parent=11 // pred_check
          %p197 = pneg %p83
        $region14: #{tpu_custom_call.1} parent=11 // pred_check_branch
          %199 = sbr.rel (%p197) target = $region16
        $region15: #{tpu_custom_call.1} parent=11 // pred_region
          %201 = vsyncadd [#allocation6], 0
          %s202 = smul.addr %s29, 12
          %s203 = smul.addr %s202, 4
          %s204 = scalar_lea.hbm %s1, %s203
          %s205 = sshll.u32 %s204, 4
          %s206 = int_to_ptr.hbm [resolvable:$true] %s205
          %s207 = sshll.u32 [#allocation5], 4
          %s208 = int_to_ptr.vmem [resolvable:$true] %s207
          %213 = dma.hbm_to_vmem [thread:$0]  %s206, 768, %s208, [#allocation6], 64, 64, 4
        $region16: #{tpu_custom_call.1} parent=11 // pred_fallthru
          _
        // Predicated region
        $region17: #{tpu_custom_call.1} parent=11 // pred_check
          %p214 = pneg %p109
        $region18: #{tpu_custom_call.1} parent=11 // pred_check_branch
          %216 = sbr.rel (%p214) target = $region20
        $region19: #{tpu_custom_call.1} parent=11 // pred_region
          %218 = vsyncadd [#allocation6], 0
          %s219 = smul.addr %s29, 3
          %s220 = scalar_lea.hbm %s2, %s219
          %s221 = sshll.u32 %s220, 4
          %s222 = int_to_ptr.hbm [resolvable:$true] %s221
          %s223 = sshll.u32 [#allocation7], 4
          %s224 = int_to_ptr.vmem [resolvable:$true] %s223
          %229 = dma.hbm_to_vmem [thread:$0]  %s222, 48, %s224, [#allocation6], 16, 16, 1
        $region20: #{tpu_custom_call.1} parent=11 // pred_fallthru
          _
        // Predicated region
        $region21: #{tpu_custom_call.1} parent=11 // pred_check
          %p230 = pneg %p135
        $region22: #{tpu_custom_call.1} parent=11 // pred_check_branch
          %232 = sbr.rel (%p230) target = $region24
        $region23: #{tpu_custom_call.1} parent=11 // pred_region
          %234 = vsyncadd [#allocation9], 0
          %s235 = smul.addr %s29, 4
          %s236 = smul.addr %s235, 4
          %s237 = scalar_lea.hbm %s3, %s236
          %s238 = sshll.u32 %s237, 4
          %s239 = int_to_ptr.hbm [resolvable:$true] %s238
          %s240 = sshll.u32 [#allocation8], 4
          %s241 = int_to_ptr.vmem [resolvable:$true] %s240
          %246 = dma.hbm_to_vmem [thread:$0]  %s239, 256, %s241, [#allocation9], 64, 64, 4
        $region24: #{tpu_custom_call.1} parent=11 // pred_fallthru
          _
        // Predicated region
        $region25: #{tpu_custom_call.1} parent=11 // pred_check
          %p247 = pneg %p156
        $region26: #{tpu_custom_call.1} parent=11 // pred_check_branch
          %249 = sbr.rel (%p247) target = $region28
        $region27: #{tpu_custom_call.1} parent=11 // pred_region
          _
        $region28: #{tpu_custom_call.1} parent=11 // pred_fallthru
          _
      $region12: #{tpu_custom_call.1} parent=5 // pred_fallthru
        _
      %p250 = scmp.lt.s32.totalorder %s19, 2
      // Predicated region
      $region29: #{tpu_custom_call.1} parent=5 // pred_check
        %p251 = pneg %p250
      $region30: #{tpu_custom_call.1} parent=5 // pred_check_branch
        %253 = sbr.rel (%p251) target = $region32
      $region31: #{tpu_custom_call.1} parent=5 // pred_region
        // Predicated region
        $region33: #{tpu_custom_call.1} parent=31 // pred_check
          %p254 = pneg %p51
        $region34: #{tpu_custom_call.1} parent=31 // pred_check_branch
          %256 = sbr.rel (%p254) target = $region36
        $region35: #{tpu_custom_call.1} parent=31 // pred_region
          %s257 = sand.u32 %s41, 1
          %s258 = scalar_lea.sflag [#allocation3], %s257
          %s259 = sand.u32 %s41, 1
          %s260 = smul.addr %s259, 4
          %s261 = scalar_lea.vmem [#allocation2], %s260
          %263 = vsyncadd %s258, 0
          %s264 = smul.addr %s26, 4
          %s265 = scalar_lea.hbm %s0, %s264
          %s267 = sshll.u32 %s265, 4
          %s268 = int_to_ptr.hbm [resolvable:$true] %s267
          %s269 = sshll.u32 %s261, 4
          %s270 = int_to_ptr.vmem [resolvable:$true] %s269
          %272 = dma.hbm_to_vmem [thread:$0]  %s268, 64, %s270, %s258
        $region36: #{tpu_custom_call.1} parent=31 // pred_fallthru
          _
      $region32: #{tpu_custom_call.1} parent=5 // pred_fallthru
        _
      %p273 = scmp.le.s32.totalorder 1, %s19
      %p274 = scmp.lt.s32.totalorder %s19, 3
      %p275 = pnand %p273, %p274
      %p276 = pneg %p275
      // Predicated region
      $region37: #{tpu_custom_call.1} parent=5 // pred_check
        _
      $region38: #{tpu_custom_call.1} parent=5 // pred_check_branch
        %278 = sbr.rel (%p275) target = $region40
      $region39: #{tpu_custom_call.1} parent=5 // pred_region
        %s279 = ssub.s32 %s19, 1
        %s280 = sand.u32 %s44, 1
        %s281 = scalar_lea.sflag [#allocation3], %s280
        %s282 = sand.u32 %s44, 1
        %s283 = smul.addr %s282, 4
        %s284 = scalar_lea.vmem [#allocation2], %s283
        // Predicated region
        $region41: #{tpu_custom_call.1} parent=39 // pred_check
          %p285 = pneg %p57
        $region42: #{tpu_custom_call.1} parent=39 // pred_check_branch
          %287 = sbr.rel (%p285) target = $region44
        $region43: #{tpu_custom_call.1} parent=39 // pred_region
          %289 = dma.done %s281, 64
        $region44: #{tpu_custom_call.1} parent=39 // pred_fallthru
          _
        // Predicated region
        $region45: #{tpu_custom_call.1} parent=39 // pred_check
          %p290 = pneg %p83
        $region46: #{tpu_custom_call.1} parent=39 // pred_check_branch
          %292 = sbr.rel (%p290) target = $region48
        $region47: #{tpu_custom_call.1} parent=39 // pred_region
          %294 = dma.done [#allocation6], 768
        $region48: #{tpu_custom_call.1} parent=39 // pred_fallthru
          _
        // Predicated region
        $region49: #{tpu_custom_call.1} parent=39 // pred_check
          %p295 = pneg %p109
        $region50: #{tpu_custom_call.1} parent=39 // pred_check_branch
          %297 = sbr.rel (%p295) target = $region52
        $region51: #{tpu_custom_call.1} parent=39 // pred_region
          %299 = dma.done [#allocation6], 48
        $region52: #{tpu_custom_call.1} parent=39 // pred_fallthru
          _
        // Predicated region
        $region53: #{tpu_custom_call.1} parent=39 // pred_check
          %p300 = pneg %p135
        $region54: #{tpu_custom_call.1} parent=39 // pred_check_branch
          %302 = sbr.rel (%p300) target = $region56
        $region55: #{tpu_custom_call.1} parent=39 // pred_region
          %304 = dma.done [#allocation9], 256
        $region56: #{tpu_custom_call.1} parent=39 // pred_fallthru
          _
        %s305 = sand.u32 %s44, 1
        %s306 = scalar_lea.sflag [#allocation3], %s305
        %s307 = sand.u32 %s44, 1
        %s308 = smul.addr %s307, 4
        %s309 = scalar_lea.vmem [#allocation2], %s308
        %p310 = pneg %p57
        %p311 = pneg %p54
        %p312 = pneg %p83
        %p313 = pneg %p80
        %p314 = pneg %p109
        %p315 = pneg %p106
        %p316 = pneg %p135
        %p317 = pneg %p132
        %p318 = pneg %p156
        %p319 = pneg %p153
        %p320 = pneg %p182
        %p321 = pneg %p179
        %s322 = sand.u32 %s169, 1
        %s323 = scalar_lea.sflag [#allocation4], %s322
        %s324 = sand.u32 %s169, 1
        %s325 = smul.addr %s324, 8
        %s326 = scalar_lea.vmem [#allocation10], %s325
        %v328 = vld [vmem:[%s284] sm:$0xf]
        %v329 = vld [vmem:[#allocation5] sm:$0xf]
        %v330 = vld [vmem:[#allocation5 + $0x4] sm:$0xf]
        %v331 = vld [vmem:[#allocation5 + $0x8] sm:$0xf]
        %v332 = vld [vmem:[#allocation5 + $0xc] sm:$0xf]
        %v333 = vld [vmem:[#allocation7] sm:$0x1]
        %v335 = vperm.slane %v333, 0
        %v341 = vunpack.c.l.b16 %v329
        %v342 = vunpack.c.l.b16 %v330
        %v343 = vunpack.c.l.b16 %v331
        %v344 = vunpack.c.l.b16 %v332
        %v345 = vpack.c.b16 %v342, %v341
        %v346 = vpack.c.b16 %v344, %v343
        %vm349 = vcmask 261120
        %v351 = vsel %vm349, %v328, 0
        %353 = vmatpush.bf16.msra.mxu0 0
        %354 = vmatpush.bf16.msra.mxu0 0
        %355 = vmatpush.bf16.msra.mxu0 0
        %356 = vmatpush.bf16.msra.mxu0 0
        %357 = vmatpush.bf16.msra.mxu0 0
        %358 = vmatpush.bf16.msra.mxu0 0
        %359 = vmatpush.bf16.msra.mxu0 %v346
        %360 = vmatpush.bf16.msra.mxu0 %v345
        %361 = vmatmul.bf16.gmra.mxu0 %v351
        %v362 = vpop.f32.mrf.mxu0
        %v363 = vadd.f32 %v335, %v362
        %v364 = vpop.f32.mrf.mxu0
        %365 = vdwg.mxu0
        %s366 = scalar_lea.vmem [#allocation5], 16
        %v367 = vld [vmem:[%s366] sm:$0xf]
        %v368 = vld [vmem:[%s366 + $0x4] sm:$0xf]
        %v369 = vld [vmem:[%s366 + $0x8] sm:$0xf]
        %v370 = vld [vmem:[%s366 + $0xc] sm:$0xf]
        %s371 = scalar_lea.vmem [#allocation7], 1
        %v372 = vld [vmem:[%s371] sm:$0x1]
        %v374 = vperm.slane %v372, 0
        %v380 = vunpack.c.l.b16 %v367
        %v381 = vunpack.c.l.b16 %v368
        %v382 = vunpack.c.l.b16 %v369
        %v383 = vunpack.c.l.b16 %v370
        %v384 = vpack.c.b16 %v381, %v380
        %v385 = vpack.c.b16 %v383, %v382
        %388 = vmatpush.bf16.msra.mxu0 0
        %389 = vmatpush.bf16.msra.mxu0 0
        %390 = vmatpush.bf16.msra.mxu0 0
        %391 = vmatpush.bf16.msra.mxu0 0
        %392 = vmatpush.bf16.msra.mxu0 0
        %393 = vmatpush.bf16.msra.mxu0 0
        %394 = vmatpush.bf16.msra.mxu0 %v385
        %395 = vmatpush.bf16.msra.mxu0 %v384
        %396 = vmatmul.bf16.gmra.mxu0 %v351
        %v397 = vpop.f32.mrf.mxu0
        %v398 = vadd.f32 %v374, %v397
        %v399 = vpop.f32.mrf.mxu0
        %400 = vdwg.mxu0
        %s401 = scalar_lea.vmem [#allocation5], 32
        %v402 = vld [vmem:[%s401] sm:$0xf]
        %v403 = vld [vmem:[%s401 + $0x4] sm:$0xf]
        %v404 = vld [vmem:[%s401 + $0x8] sm:$0xf]
        %v405 = vld [vmem:[%s401 + $0xc] sm:$0xf]
        %s406 = scalar_lea.vmem [#allocation7], 2
        %v407 = vld [vmem:[%s406] sm:$0x1]
        %v409 = vperm.slane %v407, 0
        %v415 = vunpack.c.l.b16 %v402
        %v416 = vunpack.c.l.b16 %v403
        %v417 = vunpack.c.l.b16 %v404
        %v418 = vunpack.c.l.b16 %v405
        %v419 = vpack.c.b16 %v416, %v415
        %v420 = vpack.c.b16 %v418, %v417
        %423 = vmatpush.bf16.msra.mxu0 0
        %424 = vmatpush.bf16.msra.mxu0 0
        %425 = vmatpush.bf16.msra.mxu0 0
        %426 = vmatpush.bf16.msra.mxu0 0
        %427 = vmatpush.bf16.msra.mxu0 0
        %428 = vmatpush.bf16.msra.mxu0 0
        %429 = vmatpush.bf16.msra.mxu0 %v420
        %430 = vmatpush.bf16.msra.mxu0 %v419
        %431 = vmatmul.bf16.gmra.mxu0 %v351
        %v432 = vpop.f32.mrf.mxu0
        %v433 = vadd.f32 %v409, %v432
        %v434 = vpop.f32.mrf.mxu0
        %435 = vdwg.mxu0
        %v436 = vpack.c.bf16 %v363, %v363
        %v437 = vpack.c.bf16 %v398, %v398
        %v438 = vpack.c.bf16 %v433, %v433
        %vm439 = vcmask 64512
        %v441 = vsel %vm439, %v436, 0
        %v444 = vsel %vm439, %v437, 0
        %446 = vmatpush.bf16.xpose.msra.mxu0 0
        %447 = vmatpush.bf16.xpose.msra.mxu0 0
        %448 = vmatpush.bf16.xpose.msra.mxu0 0
        %449 = vmatpush.bf16.xpose.msra.mxu0 0
        %450 = vmatpush.bf16.xpose.msra.mxu0 0
        %451 = vmatpush.bf16.xpose.msra.mxu0 0
        %452 = vmatpush.bf16.xpose.msra.mxu0 0
        %453 = vmatpush.bf16.xpose.msra.mxu0 %v444
        %454 = vmatmul.bf16.gmra.mxu0 %v441
        %v455 = vpop.f32.mrf.mxu0
        %v456 = vadd.f32 0.0, %v455
        %v457 = vpop.f32.mrf.mxu0
        %458 = vdwg.mxu0
        %v459 = vsel %vm439, %v456, -inf
        %460 = vmax.xlane.f32.xlu0 %v459
        %v461 = vpop.xlane.xlu0 %460
        %v462 = vsub.f32 %v456, %v461
        %v463 = vmul.f32 %v462, 1.442695
        %v464 = vpow.pop %v463
        %v465 = vsel %vm439, %v464, 0.0
        %466 = vadd.xlane.f32.xlu0 %v465
        %v467 = vpop.xlane.xlu0 %466
        %v468 = vrcp.pop %v467
        %v469 = vmul.f32 %v464, %v468
        %v470 = vpack.c.bf16 %v469, %v469
        %v472 = vsel %vm439, %v470, 0
        %vm474 = vcmask 1043456
        %v476 = vsel %vm474, %v438, 0
        %478 = vmatpush.bf16.msra.mxu0 0
        %479 = vmatpush.bf16.msra.mxu0 0
        %480 = vmatpush.bf16.msra.mxu0 0
        %481 = vmatpush.bf16.msra.mxu0 0
        %482 = vmatpush.bf16.msra.mxu0 0
        %483 = vmatpush.bf16.msra.mxu0 0
        %484 = vmatpush.bf16.msra.mxu0 0
        %485 = vmatpush.bf16.msra.mxu0 %v476
        %486 = vmatmul.bf16.gmra.mxu0 %v472
        %v487 = vpop.f32.mrf.mxu0
        %v488 = vadd.f32 0.0, %v487
        %v489 = vpop.f32.mrf.mxu0
        %490 = vdwg.mxu0
        %v492 = vunpack.c.l.b16 %v436
        %v493 = vpack.c.b16 %v492, %v492
        %494 = vrot.lane.b32.xlu0 %v493, 120
        %v495 = vpop.permute.xlu0 %494
        %v497 = vunpack.c.l.b16 %v437
        %v498 = vpack.c.b16 %v497, %v497
        %499 = vrot.lane.b32.xlu0 %v498, 120
        %v500 = vpop.permute.xlu0 %499
        %v502 = vsel %vm439, %v495, 0
        %v505 = vsel %vm439, %v500, 0
        %507 = vmatpush.bf16.xpose.msra.mxu0 0
        %508 = vmatpush.bf16.xpose.msra.mxu0 0
        %509 = vmatpush.bf16.xpose.msra.mxu0 0
        %510 = vmatpush.bf16.xpose.msra.mxu0 0
        %511 = vmatpush.bf16.xpose.msra.mxu0 0
        %512 = vmatpush.bf16.xpose.msra.mxu0 0
        %513 = vmatpush.bf16.xpose.msra.mxu0 0
        %514 = vmatpush.bf16.xpose.msra.mxu0 %v505
        %515 = vmatmul.bf16.gmra.mxu0 %v502
        %v516 = vpop.f32.mrf.mxu0
        %v517 = vadd.f32 0.0, %v516
        %v518 = vpop.f32.mrf.mxu0
        %519 = vdwg.mxu0
        %v520 = vsel %vm439, %v517, -inf
        %521 = vmax.xlane.f32.xlu0 %v520
        %v522 = vpop.xlane.xlu0 %521
        %v523 = vsub.f32 %v517, %v522
        %v524 = vmul.f32 %v523, 1.442695
        %v525 = vpow.pop %v524
        %v526 = vsel %vm439, %v525, 0.0
        %527 = vadd.xlane.f32.xlu0 %v526
        %v528 = vpop.xlane.xlu0 %527
        %v529 = vrcp.pop %v528
        %v530 = vmul.f32 %v525, %v529
        %v531 = vpack.c.bf16 %v530, %v530
        %v533 = vunpack.c.l.b16 %v438
        %v534 = vpack.c.b16 %v533, %v533
        %535 = vrot.lane.b32.xlu0 %v534, 120
        %v536 = vpop.permute.xlu0 %535
        %v538 = vsel %vm439, %v531, 0
        %v541 = vsel %vm474, %v536, 0
        %543 = vmatpush.bf16.msra.mxu0 0
        %544 = vmatpush.bf16.msra.mxu0 0
        %545 = vmatpush.bf16.msra.mxu0 0
        %546 = vmatpush.bf16.msra.mxu0 0
        %547 = vmatpush.bf16.msra.mxu0 0
        %548 = vmatpush.bf16.msra.mxu0 0
        %549 = vmatpush.bf16.msra.mxu0 0
        %550 = vmatpush.bf16.msra.mxu0 %v541
        %551 = vmatmul.bf16.gmra.mxu0 %v538
        %v552 = vpop.f32.mrf.mxu0
        %v553 = vadd.f32 0.0, %v552
        %v554 = vpop.f32.mrf.mxu0
        %555 = vdwg.mxu0
        %556 = vrot.lane.b32.xlu0 %v493, 112
        %v557 = vpop.permute.xlu0 %556
        %558 = vrot.lane.b32.xlu0 %v498, 112
        %v559 = vpop.permute.xlu0 %558
        %v561 = vsel %vm439, %v557, 0
        %v564 = vsel %vm439, %v559, 0
        %566 = vmatpush.bf16.xpose.msra.mxu0 0
        %567 = vmatpush.bf16.xpose.msra.mxu0 0
        %568 = vmatpush.bf16.xpose.msra.mxu0 0
        %569 = vmatpush.bf16.xpose.msra.mxu0 0
        %570 = vmatpush.bf16.xpose.msra.mxu0 0
        %571 = vmatpush.bf16.xpose.msra.mxu0 0
        %572 = vmatpush.bf16.xpose.msra.mxu0 0
        %573 = vmatpush.bf16.xpose.msra.mxu0 %v564
        %574 = vmatmul.bf16.gmra.mxu0 %v561
        %v575 = vpop.f32.mrf.mxu0
        %v576 = vadd.f32 0.0, %v575
        %v577 = vpop.f32.mrf.mxu0
        %578 = vdwg.mxu0
        %v579 = vsel %vm439, %v576, -inf
        %580 = vmax.xlane.f32.xlu0 %v579
        %v581 = vpop.xlane.xlu0 %580
        %v582 = vsub.f32 %v576, %v581
        %v583 = vmul.f32 %v582, 1.442695
        %v584 = vpow.pop %v583
        %v585 = vsel %vm439, %v584, 0.0
        %586 = vadd.xlane.f32.xlu0 %v585
        %v587 = vpop.xlane.xlu0 %586
        %v588 = vrcp.pop %v587
        %v589 = vmul.f32 %v584, %v588
        %v590 = vpack.c.bf16 %v589, %v589
        %591 = vrot.lane.b32.xlu0 %v534, 112
        %v592 = vpop.permute.xlu0 %591
        %v594 = vsel %vm439, %v590, 0
        %v597 = vsel %vm474, %v592, 0
        %599 = vmatpush.bf16.msra.mxu0 0
        %600 = vmatpush.bf16.msra.mxu0 0
        %601 = vmatpush.bf16.msra.mxu0 0
        %602 = vmatpush.bf16.msra.mxu0 0
        %603 = vmatpush.bf16.msra.mxu0 0
        %604 = vmatpush.bf16.msra.mxu0 0
        %605 = vmatpush.bf16.msra.mxu0 0
        %606 = vmatpush.bf16.msra.mxu0 %v597
        %607 = vmatmul.bf16.gmra.mxu0 %v594
        %v608 = vpop.f32.mrf.mxu0
        %v609 = vadd.f32 0.0, %v608
        %v610 = vpop.f32.mrf.mxu0
        %611 = vdwg.mxu0
        %612 = vrot.lane.b32.xlu0 %v493, 104
        %v613 = vpop.permute.xlu0 %612
        %614 = vrot.lane.b32.xlu0 %v498, 104
        %v615 = vpop.permute.xlu0 %614
        %v617 = vsel %vm439, %v613, 0
        %v620 = vsel %vm439, %v615, 0
        %622 = vmatpush.bf16.xpose.msra.mxu0 0
        %623 = vmatpush.bf16.xpose.msra.mxu0 0
        %624 = vmatpush.bf16.xpose.msra.mxu0 0
        %625 = vmatpush.bf16.xpose.msra.mxu0 0
        %626 = vmatpush.bf16.xpose.msra.mxu0 0
        %627 = vmatpush.bf16.xpose.msra.mxu0 0
        %628 = vmatpush.bf16.xpose.msra.mxu0 0
        %629 = vmatpush.bf16.xpose.msra.mxu0 %v620
        %630 = vmatmul.bf16.gmra.mxu0 %v617
        %v631 = vpop.f32.mrf.mxu0
        %v632 = vadd.f32 0.0, %v631
        %v633 = vpop.f32.mrf.mxu0
        %634 = vdwg.mxu0
        %v635 = vsel %vm439, %v632, -inf
        %636 = vmax.xlane.f32.xlu0 %v635
        %v637 = vpop.xlane.xlu0 %636
        %v638 = vsub.f32 %v632, %v637
        %v639 = vmul.f32 %v638, 1.442695
        %v640 = vpow.pop %v639
        %v641 = vsel %vm439, %v640, 0.0
        %642 = vadd.xlane.f32.xlu0 %v641
        %v643 = vpop.xlane.xlu0 %642
        %v644 = vrcp.pop %v643
        %v645 = vmul.f32 %v640, %v644
        %v646 = vpack.c.bf16 %v645, %v645
        %647 = vrot.lane.b32.xlu0 %v534, 104
        %v648 = vpop.permute.xlu0 %647
        %v650 = vsel %vm439, %v646, 0
        %v653 = vsel %vm474, %v648, 0
        %655 = vmatpush.bf16.msra.mxu0 0
        %656 = vmatpush.bf16.msra.mxu0 0
        %657 = vmatpush.bf16.msra.mxu0 0
        %658 = vmatpush.bf16.msra.mxu0 0
        %659 = vmatpush.bf16.msra.mxu0 0
        %660 = vmatpush.bf16.msra.mxu0 0
        %661 = vmatpush.bf16.msra.mxu0 0
        %662 = vmatpush.bf16.msra.mxu0 %v653
        %663 = vmatmul.bf16.gmra.mxu0 %v650
        %v664 = vpop.f32.mrf.mxu0
        %v665 = vadd.f32 0.0, %v664
        %v666 = vpop.f32.mrf.mxu0
        %667 = vdwg.mxu0
        %669 = vrot.lane.b32.xlu0 %v553, 8
        %v670 = vpop.permute.xlu0 %669
        %673 = vrot.lane.b32.xlu0 %v609, 16
        %v674 = vpop.permute.xlu0 %673
        %677 = vrot.lane.b32.xlu0 %v665, 24
        %v678 = vpop.permute.xlu0 %677
        %v680 = vsel %vm439, %v488, %v670
        %vm681 = vcmask 130048
        %v682 = vsel %vm681, %v680, %v674
        %vm683 = vcmask 195584
        %v684 = vsel %vm683, %v682, %v678
        %v685 = vpack.c.bf16 %v684, %v684
        %v686 = vld [vmem:[#allocation8] sm:$0xf]
        %v687 = vld [vmem:[#allocation8 + $0x4] sm:$0xf]
        %v688 = vld [vmem:[#allocation8 + $0x8] sm:$0xf]
        %v689 = vld [vmem:[#allocation8 + $0xc] sm:$0xf]
        %v694 = vunpack.c.l.b16 %v686
        %v695 = vunpack.c.l.b16 %v687
        %v696 = vunpack.c.l.b16 %v688
        %v697 = vunpack.c.l.b16 %v689
        %v698 = vpack.c.b16 %v695, %v694
        %v699 = vpack.c.b16 %v697, %v696
        %v703 = vsel %vm349, %v685, 0
        %705 = vmatpush.bf16.msra.mxu0 0
        %706 = vmatpush.bf16.msra.mxu0 0
        %707 = vmatpush.bf16.msra.mxu0 0
        %708 = vmatpush.bf16.msra.mxu0 0
        %709 = vmatpush.bf16.msra.mxu0 0
        %710 = vmatpush.bf16.msra.mxu0 0
        %711 = vmatpush.bf16.msra.mxu0 %v699
        %712 = vmatpush.bf16.msra.mxu0 %v698
        %713 = vmatmul.bf16.gmra.mxu0 %v703
        %v714 = vpop.f32.mrf.mxu0
        %v715 = vadd.f32 0.0, %v714
        %v716 = vpop.f32.mrf.mxu0
        %717 = vdwg.mxu0
        %p718 = scmp.eq.s32.totalorder %s29, 0
        // Predicated region
        $region57: #{tpu_custom_call.1} parent=39 // pred_check
          %p719 = pneg %p718
        $region58: #{tpu_custom_call.1} parent=39 // pred_check_branch
          %721 = sbr.rel (%p719) target = $region60
        $region59: #{tpu_custom_call.1} parent=39 // pred_region
          %722 = vst.msk [vmem:[%s326] sm:$0xff] %vm349, 0.0
        $region60: #{tpu_custom_call.1} parent=39 // pred_fallthru
          _
        %v723 = vld [vmem:[%s326] sm:$0xff]
        %v724 = vadd.f32 %v723, %v715
        %725 = vst.msk [vmem:[%s326] sm:$0xff] %vm349, %v724
        // Predicated region
        $region61: #{tpu_custom_call.1} parent=39 // pred_check
          %p726 = pneg %p718
        $region62: #{tpu_custom_call.1} parent=39 // pred_check_branch
          %728 = sbr.rel (%p726) target = $region64
        $region63: #{tpu_custom_call.1} parent=39 // pred_region
          %v729 = vld [vmem:[%s326] sm:$0xff]
          %v730 = vld [vmem:[%s4] sm:$0x1]
          %v732 = vperm.slane %v730, 0
          %v734 = vadd.f32 %v729, %v732
          %735 = vst.msk [vmem:[%s326] sm:$0xff] %vm349, %v734
        $region64: #{tpu_custom_call.1} parent=39 // pred_fallthru
          _
        %s736 = sand.u32 %s169, 1
        %s737 = scalar_lea.sflag [#allocation4], %s736
        %s738 = sand.u32 %s169, 1
        %s739 = smul.addr %s738, 8
        %s740 = scalar_lea.vmem [#allocation10], %s739
        // Predicated region
        $region65: #{tpu_custom_call.1} parent=39 // pred_check
          %p741 = pneg %p179
        $region66: #{tpu_custom_call.1} parent=39 // pred_check_branch
          %743 = sbr.rel (%p741) target = $region68
        $region67: #{tpu_custom_call.1} parent=39 // pred_region
          %745 = vsyncadd %s737, 0
          %s746 = smul.addr %s28, 8
          %s747 = scalar_lea.hbm %s5, %s746
          %s749 = sshll.u32 %s740, 4
          %s750 = int_to_ptr.vmem [resolvable:$true] %s749
          %s751 = sshll.u32 %s747, 4
          %s752 = int_to_ptr.hbm [resolvable:$true] %s751
          %754 = dma.vmem_to_hbm [thread:$0]  %s750, 128, %s752, %s737
        $region68: #{tpu_custom_call.1} parent=39 // pred_fallthru
          _
      $region40: #{tpu_custom_call.1} parent=5 // pred_fallthru
        _
      %p755 = scmp.le.s32.totalorder 2, %s19
      // Predicated region
      $region69: #{tpu_custom_call.1} parent=5 // pred_check
        %p756 = pneg %p755
      $region70: #{tpu_custom_call.1} parent=5 // pred_check_branch
        %758 = sbr.rel (%p756) target = $region72
      $region71: #{tpu_custom_call.1} parent=5 // pred_region
        %s759 = ssub.s32 %s19, 2
        // Predicated region
        $region73: #{tpu_custom_call.1} parent=71 // pred_check
          %p760 = pneg %p185
        $region74: #{tpu_custom_call.1} parent=71 // pred_check_branch
          %762 = sbr.rel (%p760) target = $region76
        $region75: #{tpu_custom_call.1} parent=71 // pred_region
          %s763 = sand.u32 %s170, 1
          %s764 = scalar_lea.sflag [#allocation4], %s763
          %s765 = sand.u32 %s170, 1
          %s766 = smul.addr %s765, 8
          %s767 = scalar_lea.vmem [#allocation10], %s766
          %769 = dma.done %s764, 128
        $region76: #{tpu_custom_call.1} parent=71 // pred_fallthru
          _
      $region72: #{tpu_custom_call.1} parent=5 // pred_fallthru
        _
    $region6: #{tpu_custom_call.1} parent=1 // loop_footer
      %s23 = sadd.s32 1, %s19
    $region7: #{tpu_custom_call.1} parent=1 // loop_footer_branch
      %18 = sbr.rel target = $region3
    $region8: #{tpu_custom_call.1} parent=1 // loop_exit
      _
    %770 = vsyncpa [#allocation3], 1
    %s771 = scalar_lea.sflag [#allocation3], 1
    %772 = vsyncpa %s771, 1
    %773 = vsyncpa [#allocation6], 1
    %774 = vsyncpa [#allocation9], 1
    %775 = vsyncpa [#allocation4], 1
    %s776 = scalar_lea.sflag [#allocation4], 1
    %777 = vsyncpa %s776, 1

</llo_original>
